<compile_context>
chip_gen: v5e
topology: v5e:2x2
jax: 0.10.0
libtpu: 0.0.40
codegen_flags: <defaults>
</compile_context>

<pallas_src>
import functools

import jax
import jax.numpy as jnp
import numpy as np
from jax.experimental import pallas as pl
from jax.experimental.pallas import tpu as pltpu


def _round_up(x, m):
    return (x + m - 1) // m * m


def _activation(y, relu, leaky):
    if not relu:
        return y
    return jnp.where(y > 0, y, 0.2 * y) if leaky else jnp.maximum(y, 0.0)


def _make_conv_kernel(m_real, norm, relu, leaky, eps=1e-5):
    """Conv (+ optional whole-image InstanceNorm) + activation.

    Used when norm is off, or when a single M-block covers the whole image.
    """
    inv_m = 1.0 / float(m_real)

    def kernel(p_ref, w_ref, o_ref):
        # p_ref: (1, K_pad, Mt)      bf16 im2col patches (K = 9*Cin)
        # w_ref: (Cout_pad, K_pad)   bf16 weight (constant index_map)
        # o_ref: (1, Cout_pad, Mt)   output block, lane axis = spatial
        y = jnp.dot(w_ref[...], p_ref[0], preferred_element_type=jnp.float32)
        if norm:
            # Single-traversal stats: sum and sum-of-squares together.
            s = jnp.sum(y, axis=1, keepdims=True)
            sq = jnp.sum(y * y, axis=1, keepdims=True)
            mean = s * inv_m
            var = jnp.maximum(sq * inv_m - mean * mean, 0.0)
            y = (y - mean) * jax.lax.rsqrt(var + eps)
        y = _activation(y, relu, leaky)
        o_ref[0] = y.astype(o_ref.dtype)

    return kernel


def _make_conv_stats_kernel():
    """Phase 1 of tiled InstanceNorm: conv + per-channel sum/sumsq accumulation."""

    def kernel(p_ref, w_ref, yraw_ref, stats_ref):
        m = pl.program_id(1)
        y = jnp.dot(w_ref[...], p_ref[0], preferred_element_type=jnp.float32)
        yraw_ref[0] = y                      # (Cout_pad, Mt) f32, lane-dense

        @pl.when(m == 0)
        def _():
            stats_ref[...] = jnp.zeros_like(stats_ref)

        s = jnp.sum(y, axis=1, keepdims=True)        # (Cout_pad, 1)
        sq = jnp.sum(y * y, axis=1, keepdims=True)   # (Cout_pad, 1)
        stats_ref[0] = stats_ref[0] + jnp.concatenate([s, sq], axis=1)

    return kernel


def _make_norm_act_kernel(m_real, relu, leaky, eps=1e-5):
    """Phase 2 of tiled InstanceNorm: normalize with precomputed stats + activation."""
    inv_m = 1.0 / float(m_real)

    def kernel(stats_ref, yraw_ref, o_ref):
        st = stats_ref[0]                            # (Cout_pad, 2) f32
        mean = st[:, 0:1] * inv_m                    # (Cout_pad, 1)
        var = jnp.maximum(st[:, 1:2] * inv_m - mean * mean, 0.0)
        inv = jax.lax.rsqrt(var + eps)
        y = (yraw_ref[0] - mean) * inv
        y = _activation(y, relu, leaky)
        o_ref[0] = y.astype(o_ref.dtype)

    return kernel


def up_convolution(x_nchw, w_oihw, *, norm=True, relu=True, leaky=False,
                   block_m=None, vmem_budget_bytes=6 * 1024 * 1024):
    """UpConvolution forward.

    x: (N, in_ch, H, W)   with in_ch % 4 == 0
    w: (out_ch, in_ch // 4, 3, 3)   (Conv2d weight, bias=False)
    Returns (N, out_ch, 2H, 2W) in NCHW, matching the PyTorch module.
    """
    N, C, H, W = x_nchw.shape
    assert C % 4 == 0
    Cq = C // 4                        # channels after PixelShuffle(2)
    Cout = w_oihw.shape[0]
    Hp, Wp = 2 * H, 2 * W              # spatial dims after shuffle (= output dims)
    M = Hp * Wp
    K = 9 * Cq
    K_pad = _round_up(K, 16)           # bf16 sublane packing
    Cout_pad = _round_up(Cout, 8)      # Cout padding on the cheap sublane axis
    out_dtype = x_nchw.dtype

    # ---- wrapper-side layout work (one XLA fusion, all in bf16) -------------
    xb = x_nchw.astype(jnp.bfloat16)
    # PixelShuffle(2): xs[n, c, 2h+i, 2w+j] = x[n, 4c+2i+j, h, w]
    xs = jnp.transpose(xb.reshape(N, Cq, 2, 2, H, W),
                       (0, 1, 4, 2, 5, 3)).reshape(N, Cq, Hp, Wp)
    xs = jnp.pad(xs, ((0, 0), (0, 0), (1, 1), (1, 1)))   # 1-px zero halo
    # im2col, channel-major: patches[n, (kh*3+kw)*Cq + c, h*Wp + w]
    taps = [xs[:, :, kh:kh + Hp, kw:kw + Wp]
            for kh in range(3) for kw in range(3)]
    patches = jnp.stack(taps, axis=1).reshape(N, K, M)

    # Weight -> (Cout, kh, kw, cin) -> (Cout, 9*Cin), pad, bf16.
    w_mat = jnp.transpose(w_oihw, (0, 2, 3, 1)).reshape(Cout, K)
    w_mat = jnp.pad(w_mat, ((0, Cout_pad - Cout),
                            (0, K_pad - K))).astype(jnp.bfloat16)

    # ---- spatial (M) tile size from a per-core VMEM budget -------------------
    if block_m is None:
        w_bytes = 2 * Cout_pad * K_pad * 2                 # weight, double-buffered
        per_col = 2 * (2 * K_pad) + 3 * (4 * Cout_pad)     # patches(bf16 x2) + y/out f32
        bm = max(128, (vmem_budget_bytes - w_bytes) // max(per_col, 1))
        block_m = int(min(_round_up(M, 128), max(128, bm // 128 * 128)))
    Mt = int(block_m)
    nM = -(-M // Mt)
    M_pad = nM * Mt
    patches = jnp.pad(patches, ((0, 0), (0, K_pad - K), (0, M_pad - M)))

    est_bytes = (2 * Cout_pad * K_pad * 2
                 + 2 * Mt * K_pad * 2
                 + 4 * Mt * Cout_pad * 4
                 + Cout_pad * 128 * 4)
    vmem_limit = int(min(100 * 2**20, max(24 * 2**20, 2 * est_bytes)))

    p_spec = pl.BlockSpec((1, K_pad, Mt), lambda b, m: (b, 0, m))
    w_spec = pl.BlockSpec((Cout_pad, K_pad), lambda b, m: (0, 0))
    o_spec = pl.BlockSpec((1, Cout_pad, Mt), lambda b, m: (b, 0, m))

    if (not norm) or nM == 1:
        # Fully fused: conv (+ norm if it fits in one block) + activation.
        out = pl.pallas_call(
            _make_conv_kernel(M, norm, relu, leaky),
            out_shape=jax.ShapeDtypeStruct((N, Cout_pad, M_pad), out_dtype),
            grid=(N, nM),
            in_specs=[p_spec, w_spec],
            out_specs=o_spec,
            compiler_params=pltpu.CompilerParams(
                dimension_semantics=("parallel",
                                     "arbitrary" if norm else "parallel"),
                vmem_limit_bytes=vmem_limit),
        )(patches, w_mat)
    else:
        # Two-phase InstanceNorm across spatial blocks.
        stats_spec = pl.BlockSpec((1, Cout_pad, 2), lambda b, m: (b, 0, 0))
        yraw, stats = pl.pallas_call(
            _make_conv_stats_kernel(),
            out_shape=(jax.ShapeDtypeStruct((N, Cout_pad, M_pad), jnp.float32),
                       jax.ShapeDtypeStruct((N, Cout_pad, 2), jnp.float32)),
            grid=(N, nM),
            in_specs=[p_spec, w_spec],
            out_specs=(o_spec, stats_spec),
            compiler_params=pltpu.CompilerParams(
                dimension_semantics=("parallel", "arbitrary"),
                vmem_limit_bytes=vmem_limit),
        )(patches, w_mat)

        out = pl.pallas_call(
            _make_norm_act_kernel(M, relu, leaky),
            out_shape=jax.ShapeDtypeStruct((N, Cout_pad, M_pad), out_dtype),
            grid=(N, nM),
            in_specs=[stats_spec, o_spec],
            out_specs=o_spec,
            compiler_params=pltpu.CompilerParams(
                dimension_semantics=("parallel", "parallel"),
                vmem_limit_bytes=vmem_limit),
        )(stats, yraw)

    # Channel-major output reshapes straight to NCHW — no transpose needed.
    out = out[:, :Cout, :M].reshape(N, Cout, Hp, Wp)
    return out


def _reference(x, w, *, norm=True, relu=True, leaky=False, eps=1e-5):
    """Pure-JAX f32 reference matching the PyTorch module semantics."""
    N, C, H, W = x.shape
    Cq = C // 4
    xs = jnp.transpose(
        x.reshape(N, Cq, 2, 2, H, W), (0, 1, 4, 2, 5, 3)
    ).reshape(N, Cq, 2 * H, 2 * W)
    y = jax.lax.conv_general_dilated(
        xs.astype(jnp.float32), w.astype(jnp.float32),
        window_strides=(1, 1), padding=((1, 1), (1, 1)),
        dimension_numbers=("NCHW", "OIHW", "NCHW"))
    if norm:
        mean = jnp.mean(y, axis=(2, 3), keepdims=True)
        var = jnp.mean((y - mean) ** 2, axis=(2, 3), keepdims=True)
        y = (y - mean) * jax.lax.rsqrt(var + eps)
    if relu:
        y = jnp.where(y > 0, y, 0.2 * y) if leaky else jnp.maximum(y, 0.0)
    return y.astype(x.dtype)


if __name__ == "__main__":
    key = jax.random.PRNGKey(0)
    kx, kw = jax.random.split(key)

    # UpConvolution(in_ch=8, out_ch=8) on a (2, 8, 16, 16) input:
    # PixelShuffle(2) -> (2, 2, 32, 32), conv -> (2, 8, 32, 32).
    N, in_ch, out_ch, H, W = 2, 8, 8, 16, 16
    Cq = in_ch // 4

    x = jax.random.normal(kx, (N, in_ch, H, W), dtype=jnp.float32)

    # Deterministic xavier_normal_-style init for the 3x3 conv weight (bias=False).
    fan_in, fan_out = Cq * 3 * 3, out_ch * 3 * 3
    std = float(np.sqrt(2.0 / (fan_in + fan_out)))
    w = std * jax.random.normal(kw, (out_ch, Cq, 3, 3), dtype=jnp.float32)

    # The kernel feeds bf16 to the MXU (f32 accumulation); compare against the
    # f32 reference at bf16-level tolerance.
    tol = dict(atol=2e-2, rtol=2e-2)

    # 1) Default config (norm + ReLU): whole image in one M-block (fused path).
    fwd = jax.jit(functools.partial(up_convolution,
                                    norm=True, relu=True, leaky=False))
    out = jax.block_until_ready(fwd(x, w))
    ref = _reference(x, w, norm=True, relu=True, leaky=False)
    assert out.shape == (N, out_ch, 2 * H, 2 * W)
    np.testing.assert_allclose(np.asarray(out), np.asarray(ref), **tol)

    # 2) LeakyReLU(0.2) branch.
    fwd_l = jax.jit(functools.partial(up_convolution,
                                      norm=True, relu=True, leaky=True))
    out_l = jax.block_until_ready(fwd_l(x, w))
    ref_l = _reference(x, w, norm=True, relu=True, leaky=True)
    np.testing.assert_allclose(np.asarray(out_l), np.asarray(ref_l), **tol)

    # 3) Force spatial tiling (block_m=128 -> 8 M-blocks) to exercise the
    #    two-phase InstanceNorm path (conv+stats, then normalize+activation).
    fwd_t = jax.jit(functools.partial(up_convolution, norm=True, relu=True,
                                      leaky=False, block_m=128))
    out_t = jax.block_until_ready(fwd_t(x, w))
    np.testing.assert_allclose(np.asarray(out_t), np.asarray(ref), **tol)

    # 4) norm=False branch (conv + ReLU only).
    fwd_n = jax.jit(functools.partial(up_convolution,
                                      norm=False, relu=True, leaky=False))
    out_n = jax.block_until_ready(fwd_n(x, w))
    ref_n = _reference(x, w, norm=False, relu=True, leaky=False)
    np.testing.assert_allclose(np.asarray(out_n), np.asarray(ref_n), **tol)

    print("KERNEL_OK")
</pallas_src>

<mosaic_0001>
module attributes {stable_mosaic.version = 11 : i64} {
  func.func @kernel(%arg0: i32, %arg1: i32, %arg2: memref<1x32x1024xbf16, #tpu.memory_space<vmem>>, %arg3: memref<8x32xbf16, #tpu.memory_space<vmem>>, %arg4: memref<1x8x1024xf32, #tpu.memory_space<vmem>>) attributes {dimension_semantics = [#tpu.dimension_semantics<parallel>, #tpu.dimension_semantics<arbitrary>], iteration_bounds = array<i64: 2, 1>, scalar_prefetch = 0 : i64, scratch_operands = 0 : i64, tpu.core_type = #tpu.core_type<tc>, window_params = [{transform_indices = @transform_0, window_bounds = array<i64: 1, 32, 1024>}, {pipeline_mode = #tpu.pipeline_mode<synchronous>, transform_indices = @transform_1, window_bounds = array<i64: 8, 32>}, {transform_indices = @transform_2, window_bounds = array<i64: 1, 8, 1024>}]} {
    %c0 = arith.constant 0 : index
    %c0_0 = arith.constant 0 : index
    %0 = vector.load %arg3[%c0, %c0_0] : memref<8x32xbf16, #tpu.memory_space<vmem>>, vector<8x32xbf16>
    %c0_1 = arith.constant 0 : index
    %c0_2 = arith.constant 0 : index
    %c0_3 = arith.constant 0 : index
    %1 = vector.load %arg2[%c0_1, %c0_2, %c0_3] : memref<1x32x1024xbf16, #tpu.memory_space<vmem>>, vector<1x32x1024xbf16>
    %2 = vector.shape_cast %1 : vector<1x32x1024xbf16> to vector<32x1024xbf16>
    %cst = arith.constant dense<0.000000e+00> : vector<8x1024xf32>
    %3 = tpu.matmul %0, %2, %cst {dimension_numbers = #tpu.dot_dimension_numbers<[1], [0], [0], [1], [0, 0, 1, 1], [], []>} : vector<8x32xbf16>, vector<32x1024xbf16>, vector<8x1024xf32> -> vector<8x1024xf32>
    %cst_4 = arith.constant dense<0.000000e+00> : vector<8xf32>
    %4 = vector.multi_reduction <add>, %3, %cst_4 [1] : vector<8x1024xf32> to vector<8xf32>
    %5 = vector.shape_cast %4 : vector<8xf32> to vector<8x1xf32>
    %6 = arith.mulf %3, %3 : vector<8x1024xf32>
    %cst_5 = arith.constant dense<0.000000e+00> : vector<8xf32>
    %7 = vector.multi_reduction <add>, %6, %cst_5 [1] : vector<8x1024xf32> to vector<8xf32>
    %8 = vector.shape_cast %7 : vector<8xf32> to vector<8x1xf32>
    %cst_6 = arith.constant 9.765625E-4 : f32
    %9 = vector.broadcast %cst_6 : f32 to vector<8x1xf32>
    %10 = arith.mulf %5, %9 : vector<8x1xf32>
    %cst_7 = arith.constant 9.765625E-4 : f32
    %11 = vector.broadcast %cst_7 : f32 to vector<8x1xf32>
    %12 = arith.mulf %8, %11 : vector<8x1xf32>
    %13 = arith.mulf %10, %10 : vector<8x1xf32>
    %14 = arith.subf %12, %13 : vector<8x1xf32>
    %cst_8 = arith.constant 0.000000e+00 : f32
    %15 = vector.broadcast %cst_8 : f32 to vector<8x1xf32>
    %16 = arith.maximumf %14, %15 : vector<8x1xf32>
    %17 = vector.broadcast %10 : vector<8x1xf32> to vector<8x1024xf32>
    %18 = arith.subf %3, %17 : vector<8x1024xf32>
    %cst_9 = arith.constant 9.99999974E-6 : f32
    %19 = vector.broadcast %cst_9 : f32 to vector<8x1xf32>
    %20 = arith.addf %16, %19 : vector<8x1xf32>
    %21 = math.rsqrt %20 : vector<8x1xf32>
    %22 = vector.broadcast %21 : vector<8x1xf32> to vector<8x1024xf32>
    %23 = arith.mulf %18, %22 : vector<8x1024xf32>
    %cst_10 = arith.constant 0.000000e+00 : f32
    %24 = vector.broadcast %cst_10 : f32 to vector<8x1024xf32>
    %25 = arith.maximumf %23, %24 : vector<8x1024xf32>
    %c0_11 = arith.constant 0 : index
    %c0_12 = arith.constant 0 : index
    %c0_13 = arith.constant 0 : index
    %26 = vector.load %arg4[%c0_11, %c0_12, %c0_13] : memref<1x8x1024xf32, #tpu.memory_space<vmem>>, vector<1x8x1024xf32>
    %27 = vector.shape_cast %26 : vector<1x8x1024xf32> to vector<8x1024xf32>
    %28 = vector.shape_cast %25 : vector<8x1024xf32> to vector<1x8x1024xf32>
    tpu.vector_store %arg4[%c0_11, %c0_12, %c0_13], %28 {strides = array<i32>} : memref<1x8x1024xf32, #tpu.memory_space<vmem>>, vector<1x8x1024xf32>,
    return
  }
  func.func @transform_0(%arg0: i32, %arg1: i32) -> (i32, i32, i32) {
    %c0_i32 = arith.constant 0 : i32
    %c0_i32_0 = arith.constant 0 : i32
    return %arg0, %c0_i32, %arg1 : i32, i32, i32
  }
  func.func @transform_1(%arg0: i32, %arg1: i32) -> (i32, i32) {
    %c0_i32 = arith.constant 0 : i32
    %c0_i32_0 = arith.constant 0 : i32
    %c0_i32_1 = arith.constant 0 : i32
    return %c0_i32, %c0_i32_0 : i32, i32
  }
  func.func @transform_2(%arg0: i32, %arg1: i32) -> (i32, i32, i32) {
    %c0_i32 = arith.constant 0 : i32
    %c0_i32_0 = arith.constant 0 : i32
    return %arg0, %c0_i32, %arg1 : i32, i32, i32
  }
}

</mosaic_0001>

<llo_original>
// kernel: up_convolution.1
$region0: #{up_convolution.1}
  #allocation0 [shape = 'u32[]', space=smem, size = 0x4, offset = 0x4, fixed_abs, tag = 'smem constant byte address 0x4 - core index']
  #allocation1 [shape = 'u32[72,128]{1,0:T(1,128)}', space=vmem, size = 0x9000, scoped, tag = 'internal scratch']
  %s0 = inlined_call_operand.vmem [shape: bf16[2,32,1024], index: 0, kind: input, shape index: {}]
  %s1 = inlined_call_operand.vmem [shape: bf16[8,32], index: 1, kind: input, shape index: {}]
  %s2 = inlined_call_operand.vmem [shape: f32[2,8,1024], index: 2, kind: output, shape index: {}]
  %s3 = sld [smem:[#allocation0]]
  $region41: #{up_convolution.1} parent=0
    _
  %s5 = ssub.s32 1, %s3
  %s6 = scalar_select 0, %s5, %s3
  loop: start=0, step=1, limit=4
  $region2: #{up_convolution.1} parent=0 // loop_pre_header
    _
  $region3: #{up_convolution.1} parent=0 // loop_header
    %s8 = sphi 0, %s12
    %p9 = scmp.ge.s32.totalorder %s8, 4
    %s15 = sphi 0, %s27
    %s16 = sphi 0, %s23
    %s17 = sphi 0, %s15
    %s18 = sphi 0, %s16
    %s19 = sphi 0, %s17
    %s20 = sphi 0, %s18
    %s32 = sphi 0, %s34
    %s35 = sphi 0, %s32
    %s36 = sphi 0, %s35
    %s52 = sphi 0, %s36
    %s56 = sphi 0, %s56
    %s58 = sphi 0, %s56
    %s59 = sphi 0, %s58
    %s73 = sphi 0, %s59
    %s81 = sphi 0, %s83
    %s84 = sphi 0, %s81
    %s85 = sphi 0, %s84
    %s101 = sphi 0, %s85
  $region4: #{up_convolution.1} parent=0 // loop_header_branch
    %11 = sbr.rel (%p9) target = $region8
  $region5: #{up_convolution.1} parent=0 // loop_body
    %s13 = ssub.s32 %s8, 1
    %s14 = ssub.s32 %s8, 2
    %s21 = sadd.s32 1, %s16
    %p22 = scmp.ge.s32.totalorder %s21, 1
    %s23 = scalar_select %p22, 0, %s21
    %s24 = sadd.s32 1, %s15
    %s25 = scalar_select %p22, %s24, %s15
    %p26 = scmp.ge.s32.totalorder %s25, 2
    %s27 = scalar_select %p26, 0, %s25
    %s28 = ssub.s32 %s15, %s27
    %s29 = ssub.s32 %s16, %s23
    %s30 = sor.u32 %s28, %s29
    %p31 = scmp.eq.s32.totalorder %s30, 0
    %s33 = sadd.s32 %s32, 1
    %s34 = scalar_select %p31, %s32, %s33
    %p37 = pneg %p31
    %p38 = scmp.eq.s32.totalorder %s8, 1
    %p39 = por %p37, %p38
    %p40 = scmp.ne.s32.totalorder %s32, %s35
    %p41 = scmp.eq.s32.totalorder %s8, 0
    %p42 = por %p40, %p41
    %p43 = scmp.ne.s32.totalorder %s32, %s35
    %p44 = scmp.eq.s32.totalorder %s13, 1
    %p45 = por %p43, %p44
    %p46 = scmp.ne.s32.totalorder %s35, %s36
    %p47 = scmp.eq.s32.totalorder %s13, 0
    %p48 = por %p46, %p47
    %p49 = scmp.ne.s32.totalorder %s35, %s36
    %p50 = scmp.eq.s32.totalorder %s14, 1
    %p51 = por %p49, %p50
    %p53 = scmp.ne.s32.totalorder %s36, %s52
    %p54 = scmp.eq.s32.totalorder %s14, 0
    %p55 = por %p53, %p54
    %s57 = sadd.s32 %s56, 1
    %p60 = scmp.eq.s32.totalorder %s8, 1
    %p61 = scmp.ne.s32.totalorder %s56, %s58
    %p62 = scmp.eq.s32.totalorder %s8, 0
    %p63 = por %p61, %p62
    %p64 = scmp.ne.s32.totalorder %s56, %s58
    %p65 = scmp.eq.s32.totalorder %s13, 1
    %p66 = por %p64, %p65
    %p67 = scmp.ne.s32.totalorder %s58, %s59
    %p68 = scmp.eq.s32.totalorder %s13, 0
    %p69 = por %p67, %p68
    %p70 = scmp.ne.s32.totalorder %s58, %s59
    %p71 = scmp.eq.s32.totalorder %s14, 1
    %p72 = por %p70, %p71
    %p74 = scmp.ne.s32.totalorder %s59, %s73
    %p75 = scmp.eq.s32.totalorder %s14, 0
    %p76 = por %p74, %p75
    %s77 = ssub.s32 %s15, %s27
    %s78 = ssub.s32 %s16, %s23
    %s79 = sor.u32 %s77, %s78
    %p80 = scmp.eq.s32.totalorder %s79, 0
    %s82 = sadd.s32 %s81, 1
    %s83 = scalar_select %p80, %s81, %s82
    %p86 = pneg %p80
    %p87 = scmp.eq.s32.totalorder %s8, 1
    %p88 = por %p86, %p87
    %p89 = scmp.ne.s32.totalorder %s81, %s84
    %p90 = scmp.eq.s32.totalorder %s8, 0
    %p91 = por %p89, %p90
    %p92 = scmp.ne.s32.totalorder %s81, %s84
    %p93 = scmp.eq.s32.totalorder %s13, 1
    %p94 = por %p92, %p93
    %p95 = scmp.ne.s32.totalorder %s84, %s85
    %p96 = scmp.eq.s32.totalorder %s13, 0
    %p97 = por %p95, %p96
    %p98 = scmp.ne.s32.totalorder %s84, %s85
    %p99 = scmp.eq.s32.totalorder %s14, 1
    %p100 = por %p98, %p99
    %p102 = scmp.ne.s32.totalorder %s85, %s101
    %p103 = scmp.eq.s32.totalorder %s14, 0
    %p104 = por %p102, %p103
    %p105 = scmp.le.s32.totalorder 1, %s8
    %p106 = scmp.lt.s32.totalorder %s8, 3
    %p107 = pnand %p105, %p106
    %p108 = pneg %p107
    // Predicated region
    $region9: #{up_convolution.1} parent=5 // pred_check
      _
    $region10: #{up_convolution.1} parent=5 // pred_check_branch
      %110 = sbr.rel (%p107) target = $region12
    $region11: #{up_convolution.1} parent=5 // pred_region
      %s111 = ssub.s32 %s8, 1
      // Predicated region
      $region13: #{up_convolution.1} parent=11 // pred_check
        %p112 = pneg %p69
      $region14: #{up_convolution.1} parent=11 // pred_check_branch
        %114 = sbr.rel (%p112) target = $region16
      $region15: #{up_convolution.1} parent=11 // pred_region
        _
      $region16: #{up_convolution.1} parent=11 // pred_fallthru
        _
    $region12: #{up_convolution.1} parent=5 // pred_fallthru
      _
    %p115 = scmp.lt.s32.totalorder %s8, 2
    // Predicated region
    $region17: #{up_convolution.1} parent=5 // pred_check
      %p116 = pneg %p115
    $region18: #{up_convolution.1} parent=5 // pred_check_branch
      %118 = sbr.rel (%p116) target = $region20
    $region19: #{up_convolution.1} parent=5 // pred_region
      // Predicated region
      $region21: #{up_convolution.1} parent=19 // pred_check
        %p119 = pneg %p42
      $region22: #{up_convolution.1} parent=19 // pred_check_branch
        %121 = sbr.rel (%p119) target = $region24
      $region23: #{up_convolution.1} parent=19 // pred_region
        %s122 = smul.u32 8, %s16
        %p123 = scmp.lt.s32.totalorder %s15, 1
        %s124 = scalar_select %p123, %s15, 1
        %p125 = scmp.lt.s32.totalorder %s122, 7
        %s126 = scalar_select %p125, %s122, 7
        %s127 = smul.addr %s124, 32
        %s128 = sadd.s32 %s126, %s127
        %s129 = smul.addr %s128, 4
        %s130 = scalar_lea.vmem %s0, %s129
        %s131 = smul.u32 8, %s16
      $region24: #{up_convolution.1} parent=19 // pred_fallthru
        _
    $region20: #{up_convolution.1} parent=5 // pred_fallthru
      _
    %p132 = scmp.le.s32.totalorder 1, %s8
    %p133 = scmp.lt.s32.totalorder %s8, 3
    %p134 = pnand %p132, %p133
    %p135 = pneg %p134
    // Predicated region
    $region25: #{up_convolution.1} parent=5 // pred_check
      _
    $region26: #{up_convolution.1} parent=5 // pred_check_branch
      %137 = sbr.rel (%p134) target = $region28
    $region27: #{up_convolution.1} parent=5 // pred_region
      %s138 = ssub.s32 %s8, 1
      %s139 = smul.u32 8, %s18
      %p140 = scmp.lt.s32.totalorder %s17, 1
      %s141 = scalar_select %p140, %s17, 1
      %p142 = scmp.lt.s32.totalorder %s139, 7
      %s143 = scalar_select %p142, %s139, 7
      %s144 = smul.addr %s141, 32
      %s145 = sadd.s32 %s143, %s144
      %s146 = smul.addr %s145, 4
      %s147 = scalar_lea.vmem %s0, %s146
      %p148 = pneg %p48
      %p149 = pneg %p45
      %p150 = pneg %p69
      %p151 = pneg %p66
      %p152 = pneg %p97
      %p153 = pneg %p94
      %s154 = smul.u32 8, %s18
      %p155 = scmp.lt.s32.totalorder %s17, 1
      %s156 = scalar_select %p155, %s17, 1
      %p157 = scmp.lt.s32.totalorder %s154, 7
      %s158 = scalar_select %p157, %s154, 7
      %s159 = smul.addr %s156, 8
      %s160 = sadd.s32 %s158, %s159
      %s161 = smul.addr %s160, 8
      %s162 = scalar_lea.vmem %s2, %s161
      %s163 = smul.u32 8, %s18
      %p164 = scmp.lt.s32.totalorder %s17, 1
      %s165 = scalar_select %p164, %s17, 1
      %p166 = scmp.lt.s32.totalorder %s163, 7
      %s167 = scalar_select %p166, %s163, 7
      %s168 = smul.addr %s165, 32
      %s169 = sadd.s32 %s167, %s168
      %s170 = smul.addr %s169, 4
      %s171 = scalar_lea.vmem %s0, %s170
      %s172 = smul.u32 8, %s18
      %s173 = smul.u32 8, %s18
      %p174 = scmp.lt.s32.totalorder %s17, 1
      %s175 = scalar_select %p174, %s17, 1
      %p176 = scmp.lt.s32.totalorder %s173, 7
      %s177 = scalar_select %p176, %s173, 7
      %s178 = smul.addr %s175, 8
      %s179 = sadd.s32 %s177, %s178
      %s180 = smul.addr %s179, 8
      %s181 = scalar_lea.vmem %s2, %s180
      %s182 = smul.u32 8, %s18
      %v184 = vld [vmem:[%s1] sm:$0xf]
      %v185 = vld [vmem:[%s171] sm:$0xff]
      %v186 = vld [vmem:[%s171 + $0x8] sm:$0xff]
      %v187 = vld [vmem:[%s171 + $0x10] sm:$0xff]
      %v188 = vld [vmem:[%s171 + $0x18] sm:$0xff]
      %v189 = vld [vmem:[%s171 + $0x20] sm:$0xff]
      %v190 = vld [vmem:[%s171 + $0x28] sm:$0xff]
      %v191 = vld [vmem:[%s171 + $0x30] sm:$0xff]
      %v192 = vld [vmem:[%s171 + $0x38] sm:$0xff]
      %v193 = vld [vmem:[%s171 + $0x40] sm:$0xff]
      %v194 = vld [vmem:[%s171 + $0x48] sm:$0xff]
      %v195 = vld [vmem:[%s171 + $0x50] sm:$0xff]
      %v196 = vld [vmem:[%s171 + $0x58] sm:$0xff]
      %v197 = vld [vmem:[%s171 + $0x60] sm:$0xff]
      %v198 = vld [vmem:[%s171 + $0x68] sm:$0xff]
      %v199 = vld [vmem:[%s171 + $0x70] sm:$0xff]
      %v200 = vld [vmem:[%s171 + $0x78] sm:$0xff]
      %v217 = vunpack.c.l.b16 %v185
      %v218 = vunpack.c.h.b16 %v185
      %v219 = vunpack.c.l.b16 %v186
      %v220 = vunpack.c.h.b16 %v186
      %v221 = vunpack.c.l.b16 %v187
      %v222 = vunpack.c.h.b16 %v187
      %v223 = vunpack.c.l.b16 %v188
      %v224 = vunpack.c.h.b16 %v188
      %v225 = vunpack.c.l.b16 %v189
      %v226 = vunpack.c.h.b16 %v189
      %v227 = vunpack.c.l.b16 %v190
      %v228 = vunpack.c.h.b16 %v190
      %v229 = vunpack.c.l.b16 %v191
      %v230 = vunpack.c.h.b16 %v191
      %v231 = vunpack.c.l.b16 %v192
      %v232 = vunpack.c.h.b16 %v192
      %v233 = vunpack.c.l.b16 %v193
      %v234 = vunpack.c.h.b16 %v193
      %v235 = vunpack.c.l.b16 %v194
      %v236 = vunpack.c.h.b16 %v194
      %v237 = vunpack.c.l.b16 %v195
      %v238 = vunpack.c.h.b16 %v195
      %v239 = vunpack.c.l.b16 %v196
      %v240 = vunpack.c.h.b16 %v196
      %v241 = vunpack.c.l.b16 %v197
      %v242 = vunpack.c.h.b16 %v197
      %v243 = vunpack.c.l.b16 %v198
      %v244 = vunpack.c.h.b16 %v198
      %v245 = vunpack.c.l.b16 %v199
      %v246 = vunpack.c.h.b16 %v199
      %v247 = vunpack.c.l.b16 %v200
      %v248 = vunpack.c.h.b16 %v200
      %v249 = vpack.c.b16 %v225, %v217
      %v250 = vpack.c.b16 %v226, %v218
      %v251 = vpack.c.b16 %v227, %v219
      %v252 = vpack.c.b16 %v228, %v220
      %v253 = vpack.c.b16 %v229, %v221
      %v254 = vpack.c.b16 %v230, %v222
      %v255 = vpack.c.b16 %v231, %v223
      %v256 = vpack.c.b16 %v232, %v224
      %v257 = vpack.c.b16 %v241, %v233
      %v258 = vpack.c.b16 %v242, %v234
      %v259 = vpack.c.b16 %v243, %v235
      %v260 = vpack.c.b16 %v244, %v236
      %v261 = vpack.c.b16 %v245, %v237
      %v262 = vpack.c.b16 %v246, %v238
      %v263 = vpack.c.b16 %v247, %v239
      %v264 = vpack.c.b16 %v248, %v240
      %vm281 = vcmask 261120
      %v283 = vsel %vm281, %v184, 0
      %285 = vmatpush.bf16.msra.mxu0 0
      %286 = vmatpush.bf16.msra.mxu0 0
      %287 = vmatpush.bf16.msra.mxu0 0
      %288 = vmatpush.bf16.msra.mxu0 0
      %289 = vmatpush.bf16.msra.mxu0 0
      %290 = vmatpush.bf16.msra.mxu0 0
      %291 = vmatpush.bf16.msra.mxu0 %v257
      %292 = vmatpush.bf16.msra.mxu0 %v249
      %293 = vmatmul.bf16.gmra.mxu0 %v283
      %v294 = vpop.f32.mrf.mxu0
      %v295 = vadd.f32 0.0, %v294
      %v296 = vpop.f32.mrf.mxu0
      %297 = vdwg.mxu0
      %298 = vmatpush.bf16.msra.mxu0 0
      %299 = vmatpush.bf16.msra.mxu0 0
      %300 = vmatpush.bf16.msra.mxu0 0
      %301 = vmatpush.bf16.msra.mxu0 0
      %302 = vmatpush.bf16.msra.mxu0 0
      %303 = vmatpush.bf16.msra.mxu0 0
      %304 = vmatpush.bf16.msra.mxu0 %v258
      %305 = vmatpush.bf16.msra.mxu0 %v250
      %306 = vmatmul.bf16.gmra.mxu0 %v283
      %v307 = vpop.f32.mrf.mxu0
      %v308 = vadd.f32 0.0, %v307
      %v309 = vpop.f32.mrf.mxu0
      %310 = vdwg.mxu0
      %311 = vmatpush.bf16.msra.mxu0 0
      %312 = vmatpush.bf16.msra.mxu0 0
      %313 = vmatpush.bf16.msra.mxu0 0
      %314 = vmatpush.bf16.msra.mxu0 0
      %315 = vmatpush.bf16.msra.mxu0 0
      %316 = vmatpush.bf16.msra.mxu0 0
      %317 = vmatpush.bf16.msra.mxu0 %v259
      %318 = vmatpush.bf16.msra.mxu0 %v251
      %319 = vmatmul.bf16.gmra.mxu0 %v283
      %v320 = vpop.f32.mrf.mxu0
      %v321 = vadd.f32 0.0, %v320
      %v322 = vpop.f32.mrf.mxu0
      %323 = vdwg.mxu0
      %324 = vmatpush.bf16.msra.mxu0 0
      %325 = vmatpush.bf16.msra.mxu0 0
      %326 = vmatpush.bf16.msra.mxu0 0
      %327 = vmatpush.bf16.msra.mxu0 0
      %328 = vmatpush.bf16.msra.mxu0 0
      %329 = vmatpush.bf16.msra.mxu0 0
      %330 = vmatpush.bf16.msra.mxu0 %v260
      %331 = vmatpush.bf16.msra.mxu0 %v252
      %332 = vmatmul.bf16.gmra.mxu0 %v283
      %v333 = vpop.f32.mrf.mxu0
      %v334 = vadd.f32 0.0, %v333
      %v335 = vpop.f32.mrf.mxu0
      %336 = vdwg.mxu0
      %337 = vmatpush.bf16.msra.mxu0 0
      %338 = vmatpush.bf16.msra.mxu0 0
      %339 = vmatpush.bf16.msra.mxu0 0
      %340 = vmatpush.bf16.msra.mxu0 0
      %341 = vmatpush.bf16.msra.mxu0 0
      %342 = vmatpush.bf16.msra.mxu0 0
      %343 = vmatpush.bf16.msra.mxu0 %v261
      %344 = vmatpush.bf16.msra.mxu0 %v253
      %345 = vmatmul.bf16.gmra.mxu0 %v283
      %v346 = vpop.f32.mrf.mxu0
      %v347 = vadd.f32 0.0, %v346
      %v348 = vpop.f32.mrf.mxu0
      %349 = vdwg.mxu0
      %350 = vmatpush.bf16.msra.mxu0 0
      %351 = vmatpush.bf16.msra.mxu0 0
      %352 = vmatpush.bf16.msra.mxu0 0
      %353 = vmatpush.bf16.msra.mxu0 0
      %354 = vmatpush.bf16.msra.mxu0 0
      %355 = vmatpush.bf16.msra.mxu0 0
      %356 = vmatpush.bf16.msra.mxu0 %v262
      %357 = vmatpush.bf16.msra.mxu0 %v254
      %358 = vmatmul.bf16.gmra.mxu0 %v283
      %v359 = vpop.f32.mrf.mxu0
      %v360 = vadd.f32 0.0, %v359
      %v361 = vpop.f32.mrf.mxu0
      %362 = vdwg.mxu0
      %363 = vmatpush.bf16.msra.mxu0 0
      %364 = vmatpush.bf16.msra.mxu0 0
      %365 = vmatpush.bf16.msra.mxu0 0
      %366 = vmatpush.bf16.msra.mxu0 0
      %367 = vmatpush.bf16.msra.mxu0 0
      %368 = vmatpush.bf16.msra.mxu0 0
      %369 = vmatpush.bf16.msra.mxu0 %v263
      %370 = vmatpush.bf16.msra.mxu0 %v255
      %371 = vmatmul.bf16.gmra.mxu0 %v283
      %v372 = vpop.f32.mrf.mxu0
      %v373 = vadd.f32 0.0, %v372
      %v374 = vpop.f32.mrf.mxu0
      %375 = vdwg.mxu0
      %376 = vmatpush.bf16.msra.mxu0 0
      %377 = vmatpush.bf16.msra.mxu0 0
      %378 = vmatpush.bf16.msra.mxu0 0
      %379 = vmatpush.bf16.msra.mxu0 0
      %380 = vmatpush.bf16.msra.mxu0 0
      %381 = vmatpush.bf16.msra.mxu0 0
      %382 = vmatpush.bf16.msra.mxu0 %v264
      %383 = vmatpush.bf16.msra.mxu0 %v256
      %384 = vmatmul.bf16.gmra.mxu0 %v283
      %v385 = vpop.f32.mrf.mxu0
      %v386 = vadd.f32 0.0, %v385
      %v387 = vpop.f32.mrf.mxu0
      %388 = vdwg.mxu0
      %v389 = vadd.f32 %v295, %v308
      %v390 = vadd.f32 %v389, %v321
      %v391 = vadd.f32 %v390, %v334
      %v392 = vadd.f32 %v391, %v347
      %v393 = vadd.f32 %v392, %v360
      %v394 = vadd.f32 %v393, %v373
      %v395 = vadd.f32 %v394, %v386
      %396 = vadd.xlane.f32.xlu0 %v395
      %v397 = vpop.xlane.xlu0 %396
      %v398 = vmul.f32 %v295, %v295
      %v399 = vmul.f32 %v308, %v308
      %v400 = vmul.f32 %v321, %v321
      %v401 = vmul.f32 %v334, %v334
      %v402 = vmul.f32 %v347, %v347
      %v403 = vmul.f32 %v360, %v360
      %v404 = vmul.f32 %v373, %v373
      %v405 = vmul.f32 %v386, %v386
      %v406 = vadd.f32 %v398, %v399
      %v407 = vadd.f32 %v406, %v400
      %v408 = vadd.f32 %v407, %v401
      %v409 = vadd.f32 %v408, %v402
      %v410 = vadd.f32 %v409, %v403
      %v411 = vadd.f32 %v410, %v404
      %v412 = vadd.f32 %v411, %v405
      %413 = vadd.xlane.f32.xlu0 %v412
      %v414 = vpop.xlane.xlu0 %413
      %v415 = vmul.f32 %v397, 0.0009765625
      %v416 = vmul.f32 %v414, 0.0009765625
      %v417 = vmul.f32 %v415, %v415
      %v418 = vsub.f32 %v416, %v417
      %v419 = vmax.f32 %v418, 0.0
      %v420 = vsub.f32 %v295, %v415
      %v421 = vsub.f32 %v308, %v415
      %v422 = vsub.f32 %v321, %v415
      %v423 = vsub.f32 %v334, %v415
      %v424 = vsub.f32 %v347, %v415
      %v425 = vsub.f32 %v360, %v415
      %v426 = vsub.f32 %v373, %v415
      %v427 = vsub.f32 %v386, %v415
      %v428 = vadd.f32 %v419, 1e-05
      %v429 = vrsqrt.pop %v428
      %v430 = vmul.f32 %v429, %v428
      %v431 = vmul.f32 %v430, %v429
      %v432 = vmul.f32 0.5, %v431
      %v433 = vsub.f32 1.5, %v432
      %v434 = vmul.f32 %v429, %v433
      %vm435 = vweird.f32 %v428
      %vm436 = vweird.f32 %v429
      %vm437 = vmor %vm435, %vm436
      %v438 = vsel %vm437, %v429, %v434
      %v439 = vmul.f32 %v420, %v438
      %v440 = vmul.f32 %v421, %v438
      %v441 = vmul.f32 %v422, %v438
      %v442 = vmul.f32 %v423, %v438
      %v443 = vmul.f32 %v424, %v438
      %v444 = vmul.f32 %v425, %v438
      %v445 = vmul.f32 %v426, %v438
      %v446 = vmul.f32 %v427, %v438
      %v447 = vmax.f32 %v439, 0.0
      %v448 = vmax.f32 %v440, 0.0
      %v449 = vmax.f32 %v441, 0.0
      %v450 = vmax.f32 %v442, 0.0
      %v451 = vmax.f32 %v443, 0.0
      %v452 = vmax.f32 %v444, 0.0
      %v453 = vmax.f32 %v445, 0.0
      %v454 = vmax.f32 %v446, 0.0
      %455 = vst [vmem:[%s181] sm:$0xff] %v447
      %456 = vst [vmem:[%s181 + $0x8] sm:$0xff] %v448
      %457 = vst [vmem:[%s181 + $0x10] sm:$0xff] %v449
      %458 = vst [vmem:[%s181 + $0x18] sm:$0xff] %v450
      %459 = vst [vmem:[%s181 + $0x20] sm:$0xff] %v451
      %460 = vst [vmem:[%s181 + $0x28] sm:$0xff] %v452
      %461 = vst [vmem:[%s181 + $0x30] sm:$0xff] %v453
      %462 = vst [vmem:[%s181 + $0x38] sm:$0xff] %v454
      %s463 = smul.u32 8, %s18
      %p464 = scmp.lt.s32.totalorder %s17, 1
      %s465 = scalar_select %p464, %s17, 1
      %p466 = scmp.lt.s32.totalorder %s463, 7
      %s467 = scalar_select %p466, %s463, 7
      %s468 = smul.addr %s465, 8
      %s469 = sadd.s32 %s467, %s468
      %s470 = smul.addr %s469, 8
      %s471 = scalar_lea.vmem %s2, %s470
      // Predicated region
      $region29: #{up_convolution.1} parent=27 // pred_check
        %p472 = pneg %p94
      $region30: #{up_convolution.1} parent=27 // pred_check_branch
        %474 = sbr.rel (%p472) target = $region32
      $region31: #{up_convolution.1} parent=27 // pred_region
        %s475 = smul.u32 8, %s18
      $region32: #{up_convolution.1} parent=27 // pred_fallthru
        _
    $region28: #{up_convolution.1} parent=5 // pred_fallthru
      _
    %p476 = scmp.le.s32.totalorder 2, %s8
    // Predicated region
    $region33: #{up_convolution.1} parent=5 // pred_check
      %p477 = pneg %p476
    $region34: #{up_convolution.1} parent=5 // pred_check_branch
      %479 = sbr.rel (%p477) target = $region36
    $region35: #{up_convolution.1} parent=5 // pred_region
      %s480 = ssub.s32 %s8, 2
      // Predicated region
      $region37: #{up_convolution.1} parent=35 // pred_check
        %p481 = pneg %p100
      $region38: #{up_convolution.1} parent=35 // pred_check_branch
        %483 = sbr.rel (%p481) target = $region40
      $region39: #{up_convolution.1} parent=35 // pred_region
        %s484 = smul.u32 8, %s20
        %p485 = scmp.lt.s32.totalorder %s19, 1
        %s486 = scalar_select %p485, %s19, 1
        %p487 = scmp.lt.s32.totalorder %s484, 7
        %s488 = scalar_select %p487, %s484, 7
        %s489 = smul.addr %s486, 8
        %s490 = sadd.s32 %s488, %s489
        %s491 = smul.addr %s490, 8
        %s492 = scalar_lea.vmem %s2, %s491
      $region40: #{up_convolution.1} parent=35 // pred_fallthru
        _
    $region36: #{up_convolution.1} parent=5 // pred_fallthru
      _
  $region6: #{up_convolution.1} parent=0 // loop_footer
    %s12 = sadd.s32 1, %s8
  $region7: #{up_convolution.1} parent=0 // loop_footer_branch
    %7 = sbr.rel target = $region3
  $region8: #{up_convolution.1} parent=0 // loop_exit
    _

</llo_original>
